<compile_context>
chip_gen: v7x
topology: tpu7x:2x2x1
jax: 0.10.0
libtpu: 0.0.40
codegen_flags: <defaults>
</compile_context>

<pallas_src>
import functools
import math

import jax
import jax.numpy as jnp
from jax.experimental import pallas as pl
from jax.experimental.pallas import tpu as pltpu


def _round_up(x, m):
    return (x + m - 1) // m * m


def _linear_kernel(x_ref, w_ref, b_ref, o_ref):
    # x_ref: (TM, Kf)  input dtype -- cast to f32 in-kernel (VPU cast hides
    #                                 under the mem-bound stream)
    # w_ref: (Kf, Nf)  f32 block-diagonal folded weight (VMEM-resident)
    # b_ref: (1,  Nf)  f32 folded bias (VMEM-resident)
    # o_ref: (TM, Nf)  f32 lane-dense output tile
    x = x_ref[...].astype(jnp.float32)
    o_ref[...] = (
        jnp.dot(x, w_ref[...], preferred_element_type=jnp.float32) + b_ref[...]
    )


def _fold_factor(d_model, num_features):
    """Smallest fold so fold*d_model is a multiple of 128 (unmasked lane-dense vst)."""
    if d_model <= 0 or d_model % 128 == 0:
        return 1
    fold = math.lcm(d_model, 128) // d_model
    # Kernel is HBM-bound (MXU has slack) so block-diagonal waste is free, but
    # don't let the folded K/N blow up for awkward d_model values.
    if fold * num_features > 256 or fold * d_model > 1024:
        if d_model < 128 and 128 % d_model == 0:
            return 128 // d_model
        return 1
    return fold


_VMEM_LIMIT = 32 << 20      # scoped VMEM requested from Mosaic (safe on v5e/v6e/v7x)
_BUFFER_BUDGET = 24 << 20   # what double-buffered input+output tiles may consume


@functools.partial(jax.jit, static_argnames=("block_m",))
def temporal_embedding(x, weight, bias, *, block_m=8192):
    """Equivalent of TemporalEmbedding.forward.

    x:      (..., num_features)  any float dtype (cast to f32 in-kernel, like x.float())
    weight: (d_model, num_features)  -- PyTorch nn.Linear layout
    bias:   (d_model,)
    returns (..., d_model) float32
    """
    *lead, num_features = x.shape
    d_model = weight.shape[0]

    w_t = weight.astype(jnp.float32).T          # (F, D)
    b = bias.astype(jnp.float32)

    x2d = x.reshape(-1, num_features)           # (M, F), original dtype
    m = x2d.shape[0]

    # ---- lane-dense output folding --------------------------------------
    fold = _fold_factor(d_model, num_features)
    kf = fold * num_features
    nf = fold * d_model

    # Block-diagonal folded weight: wb[a*F + f, c*D + d] = (a == c) * w_t[f, d]
    eye = jnp.eye(fold, dtype=jnp.float32)
    w_fold = jnp.einsum("ac,fd->afcd", eye, w_t).reshape(kf, nf)
    b_fold = jnp.tile(b, (fold,)).reshape(1, nf)

    # ---- pad M only to a multiple of `fold` (usually a no-op) ------------
    m_pad = _round_up(max(m, 1), fold)
    if m_pad != m:
        x2d = jnp.pad(x2d, ((0, m_pad - m), (0, 0)))
    m_fold = m_pad // fold
    x_fold = x2d.reshape(m_fold, kf)            # row-major fold: pure relayout

    # ---- tile size: as large as the VMEM budget allows -------------------
    lane_kf = _round_up(kf, 128)                # input tile is lane-padded in VMEM
    lane_nf = _round_up(nf, 128)
    bytes_per_row = 2 * 4 * (lane_kf + lane_nf)     # double-buffered, f32 budget
    tm_cap = max(8, (_BUFFER_BUDGET // bytes_per_row) // 8 * 8)
    tm = min(block_m, tm_cap, _round_up(m_fold, 8))
    if m_fold >= 4 * 1024:
        # Keep >= 4 grid steps (even split across v7x's 2 TCs) once each step
        # still moves enough bytes to hide the fixed per-step overhead.
        tm = min(tm, _round_up(pl.cdiv(m_fold, 4), 8))
    tm = max(8, (tm // 8) * 8)

    grid = (pl.cdiv(m_fold, tm),)               # ragged last block handled by Pallas

    in_bytes = jnp.dtype(x.dtype).itemsize
    cost = pl.CostEstimate(
        flops=2 * m_pad * num_features * d_model,
        bytes_accessed=(m_pad * num_features * in_bytes
                        + m_pad * d_model * 4
                        + (kf * nf + nf) * 4),
        transcendentals=0,
    )

    out_fold = pl.pallas_call(
        _linear_kernel,
        out_shape=jax.ShapeDtypeStruct((m_fold, nf), jnp.float32),
        grid=grid,
        in_specs=[
            pl.BlockSpec((tm, kf), lambda i: (i, 0)),   # streamed over M
            pl.BlockSpec((kf, nf), lambda i: (0, 0)),   # VMEM-resident weight
            pl.BlockSpec((1, nf), lambda i: (0, 0)),    # VMEM-resident bias
        ],
        out_specs=pl.BlockSpec((tm, nf), lambda i: (i, 0)),
        compiler_params=pltpu.CompilerParams(
            dimension_semantics=("parallel",),          # megacore on v7x
            vmem_limit_bytes=_VMEM_LIMIT,
        ),
        cost_estimate=cost,
    )(x_fold, w_fold, b_fold)

    # Unfold: (m_fold, fold*D) row-major == (m_pad, D) row-major (free reshape);
    # the [:m] slice only materializes when m % fold != 0.
    out2d = out_fold.reshape(m_pad, d_model)[:m]
    return out2d.reshape(*lead, d_model)


if __name__ == "__main__":
    # Small shapes consistent with the module's forward:
    # x: (batch, seq, num_features) time-feature tensor.
    batch, seq, num_features, d_model = 2, 8, 4, 32

    key = jax.random.PRNGKey(0)
    kx, kw, kb, kx2 = jax.random.split(key, 4)

    # Deterministic parameter init mimicking nn.Linear default:
    # U(-1/sqrt(fan_in), 1/sqrt(fan_in)).
    bound = 1.0 / (num_features ** 0.5)
    weight = jax.random.uniform(
        kw, (d_model, num_features), jnp.float32, minval=-bound, maxval=bound
    )
    bias = jax.random.uniform(
        kb, (d_model,), jnp.float32, minval=-bound, maxval=bound
    )

    x = jax.random.normal(kx, (batch, seq, num_features), jnp.float32)

    out = temporal_embedding(x, weight, bias)
    out = jax.block_until_ready(out)

    # Reference check against plain JAX (same semantics as PyTorch Linear).
    ref = x.astype(jnp.float32) @ weight.T + bias
    assert out.shape == (batch, seq, d_model)
    assert jnp.allclose(out, ref, atol=1e-5, rtol=1e-5)

    # Ragged-M + bf16-input check (exercises in-kernel cast, fold padding and
    # the ragged last grid block).
    x2 = jax.random.normal(kx2, (3, 5, num_features), jnp.bfloat16)
    out2 = jax.block_until_ready(temporal_embedding(x2, weight, bias))
    ref2 = x2.astype(jnp.float32) @ weight.T + bias
    assert out2.shape == (3, 5, d_model)
    assert jnp.allclose(out2, ref2, atol=1e-2, rtol=1e-2)

    # Non-power-of-two d_model (exercises the generalized lcm fold path).
    d3 = 24
    w3 = jax.random.uniform(kw, (d3, num_features), jnp.float32, minval=-bound, maxval=bound)
    b3 = jax.random.uniform(kb, (d3,), jnp.float32, minval=-bound, maxval=bound)
    out3 = jax.block_until_ready(temporal_embedding(x, w3, b3))
    ref3 = x.astype(jnp.float32) @ w3.T + b3
    assert out3.shape == (batch, seq, d3)
    assert jnp.allclose(out3, ref3, atol=1e-5, rtol=1e-5)

    print("KERNEL_OK")
</pallas_src>

<mosaic_0001>
module attributes {stable_mosaic.version = 11 : i64} {
  func.func @_linear_kernel(%arg0: i32, %arg1: memref<8x16xf32, #tpu.memory_space<vmem>>, %arg2: memref<16x128xf32, #tpu.memory_space<vmem>>, %arg3: memref<1x128xf32, #tpu.memory_space<vmem>>, %arg4: memref<8x128xf32, #tpu.memory_space<vmem>>) attributes {dimension_semantics = [#tpu.dimension_semantics<parallel>], iteration_bounds = array<i64: 1>, scalar_prefetch = 0 : i64, scratch_operands = 0 : i64, tpu.core_type = #tpu.core_type<tc>, window_params = [{transform_indices = @transform_0, window_bounds = array<i64: 8, 16>}, {pipeline_mode = #tpu.pipeline_mode<synchronous>, transform_indices = @transform_1, window_bounds = array<i64: 16, 128>}, {pipeline_mode = #tpu.pipeline_mode<synchronous>, transform_indices = @transform_2, window_bounds = array<i64: 1, 128>}, {transform_indices = @transform_3, window_bounds = array<i64: 8, 128>}]} {
    %c0 = arith.constant 0 : index
    %c0_0 = arith.constant 0 : index
    %0 = vector.load %arg1[%c0, %c0_0] : memref<8x16xf32, #tpu.memory_space<vmem>>, vector<8x16xf32>
    %c0_1 = arith.constant 0 : index
    %c0_2 = arith.constant 0 : index
    %1 = vector.load %arg2[%c0_1, %c0_2] : memref<16x128xf32, #tpu.memory_space<vmem>>, vector<16x128xf32>
    %cst = arith.constant dense<0.000000e+00> : vector<8x128xf32>
    %2 = tpu.matmul %0, %1, %cst {dimension_numbers = #tpu.dot_dimension_numbers<[1], [0], [0], [1], [0, 0, 1, 1], [], []>} : vector<8x16xf32>, vector<16x128xf32>, vector<8x128xf32> -> vector<8x128xf32>
    %c0_3 = arith.constant 0 : index
    %c0_4 = arith.constant 0 : index
    %3 = vector.load %arg3[%c0_3, %c0_4] : memref<1x128xf32, #tpu.memory_space<vmem>>, vector<1x128xf32>
    %4 = vector.broadcast %3 : vector<1x128xf32> to vector<8x128xf32>
    %5 = arith.addf %2, %4 : vector<8x128xf32>
    %c0_5 = arith.constant 0 : index
    %c0_6 = arith.constant 0 : index
    %6 = vector.load %arg4[%c0_5, %c0_6] : memref<8x128xf32, #tpu.memory_space<vmem>>, vector<8x128xf32>
    tpu.vector_store %arg4[%c0_5, %c0_6], %5 {strides = array<i32>} : memref<8x128xf32, #tpu.memory_space<vmem>>, vector<8x128xf32>,
    return
  }
  func.func @transform_0(%arg0: i32) -> (i32, i32) {
    %c0_i32 = arith.constant 0 : i32
    %c0_i32_0 = arith.constant 0 : i32
    return %arg0, %c0_i32 : i32, i32
  }
  func.func @transform_1(%arg0: i32) -> (i32, i32) {
    %c0_i32 = arith.constant 0 : i32
    %c0_i32_0 = arith.constant 0 : i32
    %c0_i32_1 = arith.constant 0 : i32
    return %c0_i32, %c0_i32_0 : i32, i32
  }
  func.func @transform_2(%arg0: i32) -> (i32, i32) {
    %c0_i32 = arith.constant 0 : i32
    %c0_i32_0 = arith.constant 0 : i32
    %c0_i32_1 = arith.constant 0 : i32
    return %c0_i32, %c0_i32_0 : i32, i32
  }
  func.func @transform_3(%arg0: i32) -> (i32, i32) {
    %c0_i32 = arith.constant 0 : i32
    %c0_i32_0 = arith.constant 0 : i32
    return %arg0, %c0_i32 : i32, i32
  }
}

</mosaic_0001>

<llo_original>
// kernel: tile.8
$region0: #{tile.8}
  #allocation0 [shape = 's32[1]{0}', space=sflag, size = 0x4, scoped, tag = 'scoped memory for tile.8']
  %s0 = inlined_call_operand.vmem [shape: f32[32], index: 0, kind: input, shape index: {}]
  %s1 = inlined_call_operand.vmem [shape: f32[4,32], index: 1, kind: output, shape index: {}]
  // Predicated region
  $region2: #{tile.8} parent=0 // pred_check
    _
  $region3: #{tile.8} parent=0 // pred_check_branch
    %3 = sbr.rel (0) target = $region5
  $region4: #{tile.8} parent=0 // pred_region
    _
  $region5: #{tile.8} parent=0 // pred_fallthru
    _
  %v4 = vld [vmem:[%s0] ss:$0 sm:$0xff]
  %5 = vst [vmem:[%s1] sm:$0xf] %v4

// kernel: tile.9
$region0: #{tile.9}
  %s0 = inlined_call_operand.vmem [shape: f32[4,32], index: 0, kind: input, shape index: {}]
  %s1 = inlined_call_operand.vmem [shape: f32[1,128], index: 1, kind: output, shape index: {}]
  $region1: #{tile.9} parent=0
    #allocation0 [shape = 'u8[4096]{0}', space=vmem, size = 0x1000, scoped, tag = 'scoped mem for output reshape']
    #allocation1 [shape = 'u8[4096]{0}', space=vmem, size = 0x1000, scoped, tag = 'scoped mem for input reshape']
    %s3 = sshllo.u32 0, 4
    %v4 = vld [vmem:[%s0] sm:%s3]
    %5 = vst [vmem:[#allocation1] sm:%s3] %v4
    %v6 = vld [vmem:[#allocation1] sm:$0x1]
    %vm7 = vcmask 261120
    %8 = vst.msk [vmem:[#allocation0] sm:$0x1] %vm7, %v6
    %s9 = scalar_lea.vmem [#allocation1], 3
    %v10 = vld [vmem:[%s9] sm:$0x1]
    %11 = vrot.lane.b32.xlu0 %v10, 96
    %v12 = vpop.permute.xlu0 %11
    %vm13 = vcmask 1048320
    %14 = vst.msk [vmem:[#allocation0] sm:$0x1] %vm13, %v12
    %s15 = scalar_lea.vmem [#allocation1], 2
    %v16 = vld [vmem:[%s15] sm:$0x1]
    %17 = vrot.lane.b32.xlu0 %v16, 64
    %v18 = vpop.permute.xlu0 %17
    %vm19 = vcmask 785920
    %20 = vst.msk [vmem:[#allocation0] sm:$0x1] %vm19, %v18
    %s21 = scalar_lea.vmem [#allocation1], 1
    %v22 = vld [vmem:[%s21] sm:$0x1]
    %23 = vrot.lane.b32.xlu0 %v22, 32
    %v24 = vpop.permute.xlu0 %23
    %vm25 = vcmask 523520
    %26 = vst.msk [vmem:[#allocation0] sm:$0x1] %vm25, %v24
    %s28 = sshllo.u32 0, 1
    %v30 = vld [vmem:[#allocation0] sm:%s28]
    %s31 = sshllo.u32 0, 1
    %32 = vst [vmem:[%s1] sm:%s31] %v30

// kernel: temporal_embedding.1
$region0: #{temporal_embedding.1}
  #allocation0 [shape = 'u32[]', space=smem, size = 0x4, offset = 0x4, fixed_abs, tag = 'smem constant byte address 0x4 - core index']
  #allocation1 [shape = 'u32[144,128]{1,0:T(1,128)}', space=vmem, size = 0x12000, scoped, tag = 'internal scratch']
  %s0 = inlined_call_operand.vmem [shape: f32[4,16], index: 0, kind: input, shape index: {}]
  %s1 = inlined_call_operand.vmem [shape: f32[16,128], index: 1, kind: input, shape index: {}]
  %s2 = inlined_call_operand.vmem [shape: f32[1,128], index: 2, kind: input, shape index: {}]
  %s3 = inlined_call_operand.vmem [shape: f32[4,128], index: 3, kind: output, shape index: {}]
  %s4 = sld [smem:[#allocation0]]
  $region52: #{temporal_embedding.1} parent=0
    _
  %s6 = ssub.s32 1, %s4
  %s7 = scalar_select 0, %s6, %s4
  $region1: #{temporal_embedding.1} parent=0
    #allocation2 [shape = 'u8[4096]{0}', space=vmem, size = 0x1000, scoped, tag = 'output window, operand 0, single buffered']
    // Predicated region
    $region2: #{temporal_embedding.1} parent=1 // pred_check
      _
    $region3: #{temporal_embedding.1} parent=1 // pred_check_branch
      %9 = sbr.rel (0) target = $region5
    $region4: #{temporal_embedding.1} parent=1 // pred_region
      _
    $region5: #{temporal_embedding.1} parent=1 // pred_fallthru
      _
    // Predicated region
    $region6: #{temporal_embedding.1} parent=1 // pred_check
      _
    $region7: #{temporal_embedding.1} parent=1 // pred_check_branch
      %11 = sbr.rel (0) target = $region9
    $region8: #{temporal_embedding.1} parent=1 // pred_region
      _
    $region9: #{temporal_embedding.1} parent=1 // pred_fallthru
      _
    // Predicated region
    $region10: #{temporal_embedding.1} parent=1 // pred_check
      _
    $region11: #{temporal_embedding.1} parent=1 // pred_check_branch
      %13 = sbr.rel (0) target = $region13
    $region12: #{temporal_embedding.1} parent=1 // pred_region
      _
    $region13: #{temporal_embedding.1} parent=1 // pred_fallthru
      _
    %v14 = vld [vmem:[%s0] sm:$0xff]
    %v15 = vld [vmem:[%s1] sm:$0xff]
    %v16 = vld [vmem:[%s1 + $0x8] sm:$0xff]
    %v17 = vld [vmem:[%s2] sm:$0x1]
    %v19 = vlaneseq
    %v20 = vshrl.u32 %v19, 7
    %v21 = vsub.s32 0, %v20
    %v22 = vrot.slane %v17, %v21
    %vm24 = vcmask 130048
    %v26 = vsel %vm24, %v14, 0
    %28 = vmatprep.subr.mxu0 0.0
    %29 = vmatpush1.msra.mxu0 %v15
    %30 = vmatprep.subr.mxu0 0.0
    %31 = vmatpush1.msra.mxu0 %v16
    %32 = vmatprep.subr.mxu0 0.0
    %33 = vmatpush1.msra.mxu0 0.0
    %34 = vmatprep.subr.mxu0 0.0
    %35 = vmatpush1.msra.mxu0 0.0
    %36 = vmatprep.subr.mxu0 0.0
    %37 = vmatpush1.msra.mxu0 0.0
    %38 = vmatprep.subr.mxu0 0.0
    %39 = vmatpush1.msra.mxu0 0.0
    %40 = vmatprep.subr.mxu0 0.0
    %41 = vmatpush1.msra.mxu0 0.0
    %42 = vmatprep.subr.mxu0 0.0
    %43 = vmatpush1.msra.mxu0 0.0
    %44 = vmatprep.subr.mxu0 0.0
    %45 = vmatpush1.msra.mxu0 0.0
    %46 = vmatprep.subr.mxu0 0.0
    %47 = vmatpush1.msra.mxu0 0.0
    %48 = vmatprep.subr.mxu0 0.0
    %49 = vmatpush1.msra.mxu0 0.0
    %50 = vmatprep.subr.mxu0 0.0
    %51 = vmatpush1.msra.mxu0 0.0
    %52 = vmatprep.subr.mxu0 0.0
    %53 = vmatpush1.msra.mxu0 0.0
    %54 = vmatprep.subr.mxu0 0.0
    %55 = vmatpush1.msra.mxu0 0.0
    %56 = vmatprep.subr.mxu0 0.0
    %57 = vmatpush1.msra.mxu0 0.0
    %58 = vmatprep.subr.mxu0 0.0
    %59 = vmatpush1.msra.mxu0 0.0
    %60 = vmatprep.subr.mxu0 0.0
    %61 = vmatpush1.msra.mxu0 0.0
    %62 = vmatprep.subr.mxu0 0.0
    %63 = vmatpush1.msra.mxu0 0.0
    %64 = vmatprep.subr.mxu0 0.0
    %65 = vmatpush1.msra.mxu0 0.0
    %66 = vmatprep.subr.mxu0 0.0
    %67 = vmatpush1.msra.mxu0 0.0
    %68 = vmatprep.subr.mxu0 0.0
    %69 = vmatpush1.msra.mxu0 0.0
    %70 = vmatprep.subr.mxu0 0.0
    %71 = vmatpush1.msra.mxu0 0.0
    %72 = vmatprep.subr.mxu0 0.0
    %73 = vmatpush1.msra.mxu0 0.0
    %74 = vmatprep.subr.mxu0 0.0
    %75 = vmatpush1.msra.mxu0 0.0
    %76 = vmatprep.subr.mxu0 0.0
    %77 = vmatpush1.msra.mxu0 0.0
    %78 = vmatprep.subr.mxu0 0.0
    %79 = vmatpush1.msra.mxu0 0.0
    %80 = vmatprep.subr.mxu0 0.0
    %81 = vmatpush1.msra.mxu0 0.0
    %82 = vmatprep.subr.mxu0 0.0
    %83 = vmatpush1.msra.mxu0 0.0
    %84 = vmatprep.subr.mxu0 0.0
    %85 = vmatpush1.msra.mxu0 0.0
    %86 = vmatprep.subr.mxu0 0.0
    %87 = vmatpush1.msra.mxu0 0.0
    %88 = vmatprep.subr.mxu0 0.0
    %89 = vmatpush1.msra.mxu0 0.0
    %90 = vmatprep.subr.mxu0 0.0
    %91 = vmatpush1.msra.mxu0 0.0
    %92 = vmatprep.mubr.f32.mxu0 0.0
    %93 = vmatmul.mubr.f32.gmra.mrb[0].mxu0 %v26
    %v94 = vpop.f32.mrb[0].mxu0
    %v95 = vadd.f32 %v22, %v94
    %v96 = vpop.f32.mrb[0].mxu0
    %97 = vdwg.mxu0
    %98 = vst [vmem:[#allocation2] sm:$0xff] %v95
    // Predicated region
    $region14: #{temporal_embedding.1} parent=1 // pred_check
      _
    $region15: #{temporal_embedding.1} parent=1 // pred_check_branch
      %100 = sbr.rel (0) target = $region17
    $region16: #{temporal_embedding.1} parent=1 // pred_region
      // Predicated region
      $region18: #{temporal_embedding.1} parent=16 // pred_check
        _
      $region19: #{temporal_embedding.1} parent=16 // pred_check_branch
        %102 = sbr.rel (0) target = $region21
      $region20: #{temporal_embedding.1} parent=16 // pred_region
        // Predicated region
        $region22: #{temporal_embedding.1} parent=20 // pred_check
          _
        $region23: #{temporal_embedding.1} parent=20 // pred_check_branch
          %104 = sbr.rel target = $region25
        $region24: #{temporal_embedding.1} parent=20 // pred_region
          // Predicated region
          $region37: #{temporal_embedding.1} parent=24 // pred_check
            _
          $region38: #{temporal_embedding.1} parent=24 // pred_check_branch
            %119 = sbr.rel (0) target = $region40
          $region39: #{temporal_embedding.1} parent=24 // pred_region
            loop: start=0, step=1, limit=1
            $region41: #{temporal_embedding.1} parent=39 // loop_pre_header
              _
            $region42: #{temporal_embedding.1} parent=39 // loop_header
              %s122 = sphi 0, %s126
              %p123 = scmp.ge.s32.totalorder %s122, 1
              %s127 = sphi [#allocation2], [#allocation2]
              %s128 = sphi %s3, %s3
            $region43: #{temporal_embedding.1} parent=39 // loop_header_branch
              %125 = sbr.rel (%p123) target = $region47
            $region44: #{temporal_embedding.1} parent=39 // loop_body
              %v129 = vld [vmem:[%s127] sm:$0xf]
              %130 = vst [vmem:[%s128] sm:$0xf] %v129
            $region45: #{temporal_embedding.1} parent=39 // loop_footer
              %s126 = sadd.s32 1, %s122
            $region46: #{temporal_embedding.1} parent=39 // loop_footer_branch
              %121 = sbr.rel target = $region42
            $region47: #{temporal_embedding.1} parent=39 // loop_exit
              _
          $region40: #{temporal_embedding.1} parent=24 // pred_fallthru
            _
        $region25: #{temporal_embedding.1} parent=20 // pred_fallthru
          _
        // Predicated region
        $region26: #{temporal_embedding.1} parent=20 // pred_check
          _
        $region27: #{temporal_embedding.1} parent=20 // pred_check_branch
          %106 = sbr.rel (0) target = $region29
        $region28: #{temporal_embedding.1} parent=20 // pred_region
          loop: start=0, step=1, limit=1
          $region30: #{temporal_embedding.1} parent=28 // loop_pre_header
            _
          $region31: #{temporal_embedding.1} parent=28 // loop_header
            %s109 = sphi 0, %s113
            %p110 = scmp.ge.s32.totalorder %s109, 1
            %s114 = sphi [#allocation2], [#allocation2]
            %s115 = sphi %s3, %s3
          $region32: #{temporal_embedding.1} parent=28 // loop_header_branch
            %112 = sbr.rel (%p110) target = $region36
          $region33: #{temporal_embedding.1} parent=28 // loop_body
            %v116 = vld [vmem:[%s114] sm:$0xf]
            %117 = vst [vmem:[%s115] sm:$0xf] %v116
          $region34: #{temporal_embedding.1} parent=28 // loop_footer
            %s113 = sadd.s32 1, %s109
          $region35: #{temporal_embedding.1} parent=28 // loop_footer_branch
            %108 = sbr.rel target = $region31
          $region36: #{temporal_embedding.1} parent=28 // loop_exit
            _
        $region29: #{temporal_embedding.1} parent=20 // pred_fallthru
          _
      $region21: #{temporal_embedding.1} parent=16 // pred_fallthru
        _
      %131 = vnop
    $region17: #{temporal_embedding.1} parent=1 // pred_fallthru
      _
    // Predicated region
    $region48: #{temporal_embedding.1} parent=1 // pred_check
      _
    $region49: #{temporal_embedding.1} parent=1 // pred_check_branch
      %133 = sbr.rel (0) target = $region51
    $region50: #{temporal_embedding.1} parent=1 // pred_region
      _
    $region51: #{temporal_embedding.1} parent=1 // pred_fallthru
      _

</llo_original>
